<compile_context>
chip_gen: v5e
topology: v5e:2x2
jax: 0.10.0
libtpu: 0.0.40
codegen_flags: <defaults>
</compile_context>

<pallas_src>
import math

import jax
import jax.numpy as jnp
from jax.experimental import pallas as pl
from jax.experimental.pallas import tpu as pltpu

BN_EPS = 1e-5
_HI = jax.lax.Precision.HIGHEST


def _round_up(n, m):
    return ((n + m - 1) // m) * m


# --------------------------------------------------------------------------
# Kernel: 7 x (bf16 matmul -> f32 ReLU), biases folded into the constant-1
# lane of each weight matrix, then a VPU multiply + lane reduce output head.
# --------------------------------------------------------------------------
def pinn_kernel(x_ref, w_ref, head_ref, out_ref):
    # x_ref   : (bt, D) bf16  — [x_comp | x_tar | 0 | 1], constant-1 in lane D-1
    # w_ref   : (7, D, D) bf16 — BN + biases folded; layers 4/5 carry the comp
    #           activation via an identity block (valid: it is post-ReLU >= 0)
    # head_ref: (1, D) f32    — folded output row; lane D-1 holds the out bias
    hb = x_ref[...]                                   # bf16 MXU input
    h = None
    for i in range(w_ref.shape[0]):                   # static unroll, 7 passes
        # bf16 x bf16 -> f32 accumulate: single MXU pass (default precision).
        z = jnp.dot(hb, w_ref[i], preferred_element_type=jnp.float32)
        h = jnp.maximum(z, 0.0)                       # f32 ReLU (VPU)
        hb = h.astype(jnp.bfloat16)                   # next layer's MXU input
    # Output Linear(fc_l2, 1): VPU multiply + lane reduction (no N=1 matmul);
    # bias arrives via the constant-1 lane of h * head[D-1].
    y = jnp.sum(h * head_ref[...], axis=-1, keepdims=True)
    # Lane-dense store (unmasked vst); wrapper slices [:, :1].
    out_ref[...] = jnp.broadcast_to(y, out_ref.shape).astype(out_ref.dtype)


def pinn_forward(x_comp, x_tar, folded):
    wslab, head = folded
    n_layers, D, _ = wslab.shape
    B, n_comp = x_comp.shape
    n_tar = x_tar.shape[1]

    # Batch tiling: pad (never assert), cap tile at 256, and give the grid at
    # least 2 steps once B >= 256 so v7x's two TensorCores both get work.
    # (pltpu.CORE_PARALLEL is an option there; "parallel" kept for portability.)
    B_al = _round_up(max(B, 1), 16)                   # bf16 sublane packing
    n_steps = pl.cdiv(B_al, 256)
    if B_al >= 256:
        n_steps = max(n_steps, 2)
    bt = _round_up(pl.cdiv(B_al, n_steps), 16)
    grid = (pl.cdiv(B_al, bt),)
    B_pad = bt * grid[0]

    # Pack [x_comp | x_tar | zeros | 1] into one lane-padded bf16 input.
    x = jnp.zeros((B_pad, D), jnp.float32)
    x = x.at[:B, :n_comp].set(x_comp)
    x = x.at[:B, n_comp:n_comp + n_tar].set(x_tar)
    x = x.at[:, D - 1].set(1.0)                       # constant-1 bias lane
    x = x.astype(jnp.bfloat16)

    flops = int(2 * B_pad * n_layers * D * D + 2 * B_pad * D)
    bytes_accessed = int(x.size * 2 + wslab.size * 2 + head.size * 4
                         + B_pad * D * 4)

    out = pl.pallas_call(
        pinn_kernel,
        out_shape=jax.ShapeDtypeStruct((B_pad, D), jnp.float32),
        grid_spec=pltpu.PrefetchScalarGridSpec(
            num_scalar_prefetch=0,
            grid=grid,
            in_specs=[
                pl.BlockSpec((bt, D), lambda i: (i, 0)),            # x
                pl.BlockSpec((n_layers, D, D), lambda i: (0, 0, 0)),  # W slab
                pl.BlockSpec((1, D), lambda i: (0, 0)),             # head row
            ],
            out_specs=pl.BlockSpec((bt, D), lambda i: (i, 0)),
        ),
        compiler_params=pltpu.CompilerParams(
            dimension_semantics=("parallel",)),
        cost_estimate=pl.CostEstimate(
            flops=flops, transcendentals=0, bytes_accessed=bytes_accessed),
    )(x, wslab, head)
    return out[:B, :1]


# --------------------------------------------------------------------------
# PyTorch-equivalent parameters (unfolded).
# --------------------------------------------------------------------------
def make_params(key, dims):
    (n_comp, comp_l1, comp_l2, comp_l3,
     n_tar, tar_l1, tar_l2, tar_l3, tar_l4, tar_l5,
     fc_l1, fc_l2) = dims

    def linear(k, fi, fo):
        kw, kb = jax.random.split(k)
        bound = 1.0 / math.sqrt(fi)
        w = jax.random.uniform(kw, (fi, fo), jnp.float32, -bound, bound)
        b = jax.random.uniform(kb, (fo,), jnp.float32, -bound, bound)
        return w, b

    def bn(k, n):  # non-trivial eval-mode running stats (exercise the folding)
        k1, k2, k3, k4 = jax.random.split(k, 4)
        g = jax.random.uniform(k1, (n,), jnp.float32, 0.5, 1.5)
        beta = 0.1 * jax.random.normal(k2, (n,), jnp.float32)
        mean = 0.1 * jax.random.normal(k3, (n,), jnp.float32)
        var = jax.random.uniform(k4, (n,), jnp.float32, 0.5, 1.5)
        return g, beta, mean, var

    def chain(k, sizes):
        ks = jax.random.split(k, len(sizes) - 1)
        layers = []
        for kk, fi, fo in zip(ks, sizes[:-1], sizes[1:]):
            k_l, k_b = jax.random.split(kk)
            w, b = linear(k_l, fi, fo)
            layers.append((w, b, *bn(k_b, fo)))
        return layers

    kc, kt, kf, ko = jax.random.split(key, 4)
    comp = chain(kc, [n_comp, comp_l1, comp_l2, comp_l3])
    tar = chain(kt, [n_tar, tar_l1, tar_l2, tar_l3, tar_l4, tar_l5])
    comb = chain(kf, [comp_l3 + tar_l5, fc_l1, fc_l2])
    ow, ob = linear(ko, fc_l2, 1)
    return comp, tar, comb, (ow, ob)


# --------------------------------------------------------------------------
# One-time folding: BN into next-layer weights, biases into the constant-1
# lane (row D-1), everything packed into (W-slab[7,D,D] bf16, head[1,D] f32).
# --------------------------------------------------------------------------
def fold_params(params, dims):
    (n_comp, comp_l1, comp_l2, comp_l3,
     n_tar, tar_l1, tar_l2, tar_l3, tar_l4, tar_l5,
     fc_l1, fc_l2) = dims
    comp, tar, comb, (oW, ob) = params

    max_w = max(n_comp + n_tar, comp_l1 + tar_l1, comp_l2 + tar_l2,
                comp_l3 + tar_l3, comp_l3 + tar_l4, comp_l3 + tar_l5,
                fc_l1, fc_l2)
    D = 128 * -(-(max_w + 1) // 128)          # +1: reserve lane D-1 for the 1
    BIAS = D - 1

    def ss(layer):
        _, _, g, beta, mean, var = layer
        s = g / jnp.sqrt(var + BN_EPS)
        return s, beta - mean * s

    dotp = lambda a, b: jnp.dot(a, b, precision=_HI)
    zW = lambda: jnp.zeros((D, D), jnp.float32)
    eye = jnp.eye(comp_l3, dtype=jnp.float32)

    (cW1, cb1), (cW2, cb2), (cW3, cb3) = [(l[0], l[1]) for l in comp]
    (tW1, tb1), (tW2, tb2), (tW3, tb3), (tW4, tb4), (tW5, tb5) = \
        [(l[0], l[1]) for l in tar]
    (fW1, fb1), (fW2, fb2) = [(l[0], l[1]) for l in comb]
    s_c1, t_c1 = ss(comp[0]); s_c2, t_c2 = ss(comp[1]); s_c3, t_c3 = ss(comp[2])
    s_t1, t_t1 = ss(tar[0]); s_t2, t_t2 = ss(tar[1]); s_t3, t_t3 = ss(tar[2])
    s_t4, t_t4 = ss(tar[3]); s_t5, t_t5 = ss(tar[4])
    s_f1, t_f1 = ss(comb[0]); s_f2, t_f2 = ss(comb[1])

    # Layer 1: raw weights, outputs laid out [comp | tar]; biases in row BIAS.
    W1 = (zW().at[:n_comp, :comp_l1].set(cW1)
              .at[n_comp:n_comp + n_tar, comp_l1:comp_l1 + tar_l1].set(tW1)
              .at[BIAS, :comp_l1].set(cb1)
              .at[BIAS, comp_l1:comp_l1 + tar_l1].set(tb1)
              .at[BIAS, BIAS].set(1.0))

    # Layer 2 (consumes BN of comp-1 / tar-1).
    W2 = (zW().at[:comp_l1, :comp_l2].set(s_c1[:, None] * cW2)
              .at[comp_l1:comp_l1 + tar_l1,
                  comp_l2:comp_l2 + tar_l2].set(s_t1[:, None] * tW2)
              .at[BIAS, :comp_l2].set(dotp(t_c1, cW2) + cb2)
              .at[BIAS, comp_l2:comp_l2 + tar_l2].set(dotp(t_t1, tW2) + tb2)
              .at[BIAS, BIAS].set(1.0))

    # Layer 3 (consumes BN of comp-2 / tar-2).
    W3 = (zW().at[:comp_l2, :comp_l3].set(s_c2[:, None] * cW3)
              .at[comp_l2:comp_l2 + tar_l2,
                  comp_l3:comp_l3 + tar_l3].set(s_t2[:, None] * tW3)
              .at[BIAS, :comp_l3].set(dotp(t_c2, cW3) + cb3)
              .at[BIAS, comp_l3:comp_l3 + tar_l3].set(dotp(t_t2, tW3) + tb3)
              .at[BIAS, BIAS].set(1.0))

    # Layer 4: identity carry of the finished comp activation (post-ReLU, so
    # the trailing ReLU is a no-op on it) + tar layer 4 with BN(tar-3) folded.
    W4 = (zW().at[:comp_l3, :comp_l3].set(eye)
              .at[comp_l3:comp_l3 + tar_l3,
                  comp_l3:comp_l3 + tar_l4].set(s_t3[:, None] * tW4)
              .at[BIAS, comp_l3:comp_l3 + tar_l4].set(dotp(t_t3, tW4) + tb4)
              .at[BIAS, BIAS].set(1.0))

    # Layer 5: identity carry of comp + tar layer 5 with BN(tar-4) folded.
    W5 = (zW().at[:comp_l3, :comp_l3].set(eye)
              .at[comp_l3:comp_l3 + tar_l4,
                  comp_l3:comp_l3 + tar_l5].set(s_t4[:, None] * tW5)
              .at[BIAS, comp_l3:comp_l3 + tar_l5].set(dotp(t_t4, tW5) + tb5)
              .at[BIAS, BIAS].set(1.0))

    # Layer 6: combined L1 (activation layout == torch.cat order);
    # folds BN(comp-3) and BN(tar-5).
    fW1c, fW1t = fW1[:comp_l3, :], fW1[comp_l3:, :]
    W6 = (zW().at[:comp_l3, :fc_l1].set(s_c3[:, None] * fW1c)
              .at[comp_l3:comp_l3 + tar_l5, :fc_l1].set(s_t5[:, None] * fW1t)
              .at[BIAS, :fc_l1].set(dotp(t_c3, fW1c) + dotp(t_t5, fW1t) + fb1)
              .at[BIAS, BIAS].set(1.0))

    # Layer 7: combined L2 (folds BN of combined L1).
    W7 = (zW().at[:fc_l1, :fc_l2].set(s_f1[:, None] * fW2)
              .at[BIAS, :fc_l2].set(dotp(t_f1, fW2) + fb2)
              .at[BIAS, BIAS].set(1.0))

    # Output head: folded row (BN of combined L2) + output bias in lane BIAS.
    head = (jnp.zeros((1, D), jnp.float32)
            .at[0, :fc_l2].set(s_f2 * oW[:, 0])
            .at[0, BIAS].set(dotp(t_f2, oW[:, 0]) + ob[0]))

    wslab = jnp.stack([W1, W2, W3, W4, W5, W6, W7]).astype(jnp.bfloat16)
    return wslab, head


# --------------------------------------------------------------------------
# References.
# --------------------------------------------------------------------------
def pinn_reference(x_comp, x_tar, params):
    """Original (unfolded) module, f32, eval-mode BN / identity dropout."""
    comp, tar, comb, (oW, ob) = params

    def layer(x, prm):
        w, b, g, beta, mean, var = prm
        h = jnp.maximum(jnp.dot(x, w, precision=_HI) + b, 0.0)
        return (h - mean) / jnp.sqrt(var + BN_EPS) * g + beta

    hc = x_comp
    for prm in comp:
        hc = layer(hc, prm)
    ht = x_tar
    for prm in tar:
        ht = layer(ht, prm)
    h = jnp.concatenate([hc, ht], axis=1)
    for prm in comb:
        h = layer(h, prm)
    return jnp.dot(h, oW, precision=_HI) + ob


def pinn_folded_reference(x_comp, x_tar, folded):
    """Pure-JAX replica of exactly what the kernel computes (structural check)."""
    wslab, head = folded
    n_layers, D, _ = wslab.shape
    B, n_comp = x_comp.shape
    n_tar = x_tar.shape[1]
    x = jnp.zeros((B, D), jnp.float32)
    x = x.at[:, :n_comp].set(x_comp)
    x = x.at[:, n_comp:n_comp + n_tar].set(x_tar)
    x = x.at[:, D - 1].set(1.0)
    hb = x.astype(jnp.bfloat16)
    h = None
    for i in range(n_layers):
        h = jnp.maximum(
            jnp.dot(hb, wslab[i], preferred_element_type=jnp.float32), 0.0)
        hb = h.astype(jnp.bfloat16)
    return jnp.sum(h * head, axis=-1, keepdims=True)


if __name__ == "__main__":
    # (n_comp, comp_l1, comp_l2, comp_l3,
    #  n_tar, tar_l1, tar_l2, tar_l3, tar_l4, tar_l5, fc_l1, fc_l2)
    dims = (16, 32, 32, 32, 24, 48, 40, 40, 32, 32, 64, 32)
    B = 8

    key = jax.random.PRNGKey(0)
    k_xc, k_xt, k_p = jax.random.split(key, 3)
    x_comp = jax.random.normal(k_xc, (B, dims[0]), jnp.float32)
    x_tar = jax.random.normal(k_xt, (B, dims[4]), jnp.float32)

    params = make_params(k_p, dims)         # PyTorch-equivalent (unfolded)
    folded = fold_params(params, dims)      # one-time constant folding / packing

    y = pinn_forward(x_comp, x_tar, folded)
    y = jax.block_until_ready(y)
    assert y.shape == (B, 1)

    # Structural check: kernel == pure-JAX replica of the folded bf16 math.
    y_fold = pinn_folded_reference(x_comp, x_tar, folded)
    assert jnp.allclose(y, y_fold, atol=1e-4, rtol=1e-4), (
        float(jnp.max(jnp.abs(y - y_fold))))

    # Semantic check vs. the original f32 module; the gap is the bf16
    # quantization of the weight slab / activations (f32 accumulation).
    y_ref = pinn_reference(x_comp, x_tar, params)
    assert jnp.allclose(y, y_ref, atol=5e-2, rtol=5e-2), (
        float(jnp.max(jnp.abs(y - y_ref))))

    print("KERNEL_OK")
</pallas_src>

<mosaic_0001>
module attributes {stable_mosaic.version = 11 : i64} {
  func.func @pinn_kernel(%arg0: i32, %arg1: memref<16x128xbf16, #tpu.memory_space<vmem>>, %arg2: memref<7x128x128xbf16, #tpu.memory_space<vmem>>, %arg3: memref<1x128xf32, #tpu.memory_space<vmem>>, %arg4: memref<16x128xf32, #tpu.memory_space<vmem>>) attributes {dimension_semantics = [#tpu.dimension_semantics<parallel>], iteration_bounds = array<i64: 1>, scalar_prefetch = 0 : i64, scratch_operands = 0 : i64, tpu.core_type = #tpu.core_type<tc>, window_params = [{transform_indices = @transform_0, window_bounds = array<i64: 16, 128>}, {pipeline_mode = #tpu.pipeline_mode<synchronous>, transform_indices = @transform_1, window_bounds = array<i64: 7, 128, 128>}, {pipeline_mode = #tpu.pipeline_mode<synchronous>, transform_indices = @transform_2, window_bounds = array<i64: 1, 128>}, {transform_indices = @transform_3, window_bounds = array<i64: 16, 128>}]} {
    %c0 = arith.constant 0 : index
    %c0_0 = arith.constant 0 : index
    %0 = vector.load %arg1[%c0, %c0_0] : memref<16x128xbf16, #tpu.memory_space<vmem>>, vector<16x128xbf16>
    %c0_1 = arith.constant 0 : index
    %c0_2 = arith.constant 0 : index
    %c0_3 = arith.constant 0 : index
    %1 = vector.load %arg2[%c0_1, %c0_2, %c0_3] : memref<7x128x128xbf16, #tpu.memory_space<vmem>>, vector<1x128x128xbf16>
    %2 = vector.shape_cast %1 : vector<1x128x128xbf16> to vector<128x128xbf16>
    %cst = arith.constant dense<0.000000e+00> : vector<16x128xf32>
    %3 = tpu.matmul %0, %2, %cst {dimension_numbers = #tpu.dot_dimension_numbers<[1], [0], [0], [1], [0, 0, 1, 1], [], []>} : vector<16x128xbf16>, vector<128x128xbf16>, vector<16x128xf32> -> vector<16x128xf32>
    %cst_4 = arith.constant 0.000000e+00 : f32
    %4 = vector.broadcast %cst_4 : f32 to vector<16x128xf32>
    %5 = arith.maximumf %3, %4 : vector<16x128xf32>
    %6 = arith.truncf %5 : vector<16x128xf32> to vector<16x128xbf16>
    %c1 = arith.constant 1 : index
    %c0_5 = arith.constant 0 : index
    %c0_6 = arith.constant 0 : index
    %7 = vector.load %arg2[%c1, %c0_5, %c0_6] : memref<7x128x128xbf16, #tpu.memory_space<vmem>>, vector<1x128x128xbf16>
    %8 = vector.shape_cast %7 : vector<1x128x128xbf16> to vector<128x128xbf16>
    %cst_7 = arith.constant dense<0.000000e+00> : vector<16x128xf32>
    %9 = tpu.matmul %6, %8, %cst_7 {dimension_numbers = #tpu.dot_dimension_numbers<[1], [0], [0], [1], [0, 0, 1, 1], [], []>} : vector<16x128xbf16>, vector<128x128xbf16>, vector<16x128xf32> -> vector<16x128xf32>
    %cst_8 = arith.constant 0.000000e+00 : f32
    %10 = vector.broadcast %cst_8 : f32 to vector<16x128xf32>
    %11 = arith.maximumf %9, %10 : vector<16x128xf32>
    %12 = arith.truncf %11 : vector<16x128xf32> to vector<16x128xbf16>
    %c2 = arith.constant 2 : index
    %c0_9 = arith.constant 0 : index
    %c0_10 = arith.constant 0 : index
    %13 = vector.load %arg2[%c2, %c0_9, %c0_10] : memref<7x128x128xbf16, #tpu.memory_space<vmem>>, vector<1x128x128xbf16>
    %14 = vector.shape_cast %13 : vector<1x128x128xbf16> to vector<128x128xbf16>
    %cst_11 = arith.constant dense<0.000000e+00> : vector<16x128xf32>
    %15 = tpu.matmul %12, %14, %cst_11 {dimension_numbers = #tpu.dot_dimension_numbers<[1], [0], [0], [1], [0, 0, 1, 1], [], []>} : vector<16x128xbf16>, vector<128x128xbf16>, vector<16x128xf32> -> vector<16x128xf32>
    %cst_12 = arith.constant 0.000000e+00 : f32
    %16 = vector.broadcast %cst_12 : f32 to vector<16x128xf32>
    %17 = arith.maximumf %15, %16 : vector<16x128xf32>
    %18 = arith.truncf %17 : vector<16x128xf32> to vector<16x128xbf16>
    %c3 = arith.constant 3 : index
    %c0_13 = arith.constant 0 : index
    %c0_14 = arith.constant 0 : index
    %19 = vector.load %arg2[%c3, %c0_13, %c0_14] : memref<7x128x128xbf16, #tpu.memory_space<vmem>>, vector<1x128x128xbf16>
    %20 = vector.shape_cast %19 : vector<1x128x128xbf16> to vector<128x128xbf16>
    %cst_15 = arith.constant dense<0.000000e+00> : vector<16x128xf32>
    %21 = tpu.matmul %18, %20, %cst_15 {dimension_numbers = #tpu.dot_dimension_numbers<[1], [0], [0], [1], [0, 0, 1, 1], [], []>} : vector<16x128xbf16>, vector<128x128xbf16>, vector<16x128xf32> -> vector<16x128xf32>
    %cst_16 = arith.constant 0.000000e+00 : f32
    %22 = vector.broadcast %cst_16 : f32 to vector<16x128xf32>
    %23 = arith.maximumf %21, %22 : vector<16x128xf32>
    %24 = arith.truncf %23 : vector<16x128xf32> to vector<16x128xbf16>
    %c4 = arith.constant 4 : index
    %c0_17 = arith.constant 0 : index
    %c0_18 = arith.constant 0 : index
    %25 = vector.load %arg2[%c4, %c0_17, %c0_18] : memref<7x128x128xbf16, #tpu.memory_space<vmem>>, vector<1x128x128xbf16>
    %26 = vector.shape_cast %25 : vector<1x128x128xbf16> to vector<128x128xbf16>
    %cst_19 = arith.constant dense<0.000000e+00> : vector<16x128xf32>
    %27 = tpu.matmul %24, %26, %cst_19 {dimension_numbers = #tpu.dot_dimension_numbers<[1], [0], [0], [1], [0, 0, 1, 1], [], []>} : vector<16x128xbf16>, vector<128x128xbf16>, vector<16x128xf32> -> vector<16x128xf32>
    %cst_20 = arith.constant 0.000000e+00 : f32
    %28 = vector.broadcast %cst_20 : f32 to vector<16x128xf32>
    %29 = arith.maximumf %27, %28 : vector<16x128xf32>
    %30 = arith.truncf %29 : vector<16x128xf32> to vector<16x128xbf16>
    %c5 = arith.constant 5 : index
    %c0_21 = arith.constant 0 : index
    %c0_22 = arith.constant 0 : index
    %31 = vector.load %arg2[%c5, %c0_21, %c0_22] : memref<7x128x128xbf16, #tpu.memory_space<vmem>>, vector<1x128x128xbf16>
    %32 = vector.shape_cast %31 : vector<1x128x128xbf16> to vector<128x128xbf16>
    %cst_23 = arith.constant dense<0.000000e+00> : vector<16x128xf32>
    %33 = tpu.matmul %30, %32, %cst_23 {dimension_numbers = #tpu.dot_dimension_numbers<[1], [0], [0], [1], [0, 0, 1, 1], [], []>} : vector<16x128xbf16>, vector<128x128xbf16>, vector<16x128xf32> -> vector<16x128xf32>
    %cst_24 = arith.constant 0.000000e+00 : f32
    %34 = vector.broadcast %cst_24 : f32 to vector<16x128xf32>
    %35 = arith.maximumf %33, %34 : vector<16x128xf32>
    %36 = arith.truncf %35 : vector<16x128xf32> to vector<16x128xbf16>
    %c6 = arith.constant 6 : index
    %c0_25 = arith.constant 0 : index
    %c0_26 = arith.constant 0 : index
    %37 = vector.load %arg2[%c6, %c0_25, %c0_26] : memref<7x128x128xbf16, #tpu.memory_space<vmem>>, vector<1x128x128xbf16>
    %38 = vector.shape_cast %37 : vector<1x128x128xbf16> to vector<128x128xbf16>
    %cst_27 = arith.constant dense<0.000000e+00> : vector<16x128xf32>
    %39 = tpu.matmul %36, %38, %cst_27 {dimension_numbers = #tpu.dot_dimension_numbers<[1], [0], [0], [1], [0, 0, 1, 1], [], []>} : vector<16x128xbf16>, vector<128x128xbf16>, vector<16x128xf32> -> vector<16x128xf32>
    %cst_28 = arith.constant 0.000000e+00 : f32
    %40 = vector.broadcast %cst_28 : f32 to vector<16x128xf32>
    %41 = arith.maximumf %39, %40 : vector<16x128xf32>
    %c0_29 = arith.constant 0 : index
    %c0_30 = arith.constant 0 : index
    %42 = vector.load %arg3[%c0_29, %c0_30] : memref<1x128xf32, #tpu.memory_space<vmem>>, vector<1x128xf32>
    %43 = vector.broadcast %42 : vector<1x128xf32> to vector<16x128xf32>
    %44 = arith.mulf %41, %43 : vector<16x128xf32>
    %cst_31 = arith.constant dense<0.000000e+00> : vector<16xf32>
    %45 = vector.multi_reduction <add>, %44, %cst_31 [1] : vector<16x128xf32> to vector<16xf32>
    %46 = vector.shape_cast %45 : vector<16xf32> to vector<16x1xf32>
    %47 = vector.shape_cast %46 : vector<16x1xf32> to vector<16x1xf32>
    %48 = vector.broadcast %47 : vector<16x1xf32> to vector<16x128xf32>
    %c0_32 = arith.constant 0 : index
    %c0_33 = arith.constant 0 : index
    %49 = vector.load %arg4[%c0_32, %c0_33] : memref<16x128xf32, #tpu.memory_space<vmem>>, vector<16x128xf32>
    tpu.vector_store %arg4[%c0_32, %c0_33], %48 {strides = array<i32>} : memref<16x128xf32, #tpu.memory_space<vmem>>, vector<16x128xf32>,
    return
  }
  func.func @transform_0(%arg0: i32) -> (i32, i32) {
    %c0_i32 = arith.constant 0 : i32
    %c0_i32_0 = arith.constant 0 : i32
    return %arg0, %c0_i32 : i32, i32
  }
  func.func @transform_1(%arg0: i32) -> (i32, i32, i32) {
    %c0_i32 = arith.constant 0 : i32
    %c0_i32_0 = arith.constant 0 : i32
    %c0_i32_1 = arith.constant 0 : i32
    %c0_i32_2 = arith.constant 0 : i32
    return %c0_i32, %c0_i32_0, %c0_i32_1 : i32, i32, i32
  }
  func.func @transform_2(%arg0: i32) -> (i32, i32) {
    %c0_i32 = arith.constant 0 : i32
    %c0_i32_0 = arith.constant 0 : i32
    %c0_i32_1 = arith.constant 0 : i32
    return %c0_i32, %c0_i32_0 : i32, i32
  }
  func.func @transform_3(%arg0: i32) -> (i32, i32) {
    %c0_i32 = arith.constant 0 : i32
    %c0_i32_0 = arith.constant 0 : i32
    return %arg0, %c0_i32 : i32, i32
  }
}

</mosaic_0001>

<llo_original>
// kernel: tpu_custom_call.1
$region0: #{tpu_custom_call.1}
  #allocation0 [shape = 'u32[]', space=smem, size = 0x4, offset = 0x4, fixed_abs, tag = 'smem constant byte address 0x4 - core index']
  #allocation1 [shape = 'u32[72,128]{1,0:T(1,128)}', space=vmem, size = 0x9000, scoped, tag = 'internal scratch']
  %s0 = inlined_call_operand.hbm [shape: bf16[16,128], index: 0, kind: input, shape index: {}]
  %s1 = inlined_call_operand.hbm [shape: bf16[7,128,128], index: 1, kind: input, shape index: {}]
  %s2 = inlined_call_operand.vmem [shape: f32[1,128], index: 2, kind: input, shape index: {}]
  %s3 = inlined_call_operand.hbm [shape: f32[16,128], index: 3, kind: output, shape index: {}]
  %s4 = sld [smem:[#allocation0]]
  $region30: #{tpu_custom_call.1} parent=0
    _
  %s6 = ssub.s32 1, %s4
  %s7 = scalar_select 0, %s6, %s4
  $region1: #{tpu_custom_call.1} parent=0
    #allocation2 [shape = 'u8[4096]{0}', space=vmem, size = 0x1000, scoped, tag = 'input window, operand 0, single buffered']
    #allocation3 [shape = 's32[1]{0}', space=sflag, size = 0x4, scoped, tag = 'scoped memory for tpu_custom_call.1']
    #allocation4 [shape = 's32[1]{0}', space=sflag, size = 0x4, scoped, tag = 'scoped memory for tpu_custom_call.1']
    #allocation5 [shape = 'u8[229376]{0}', space=vmem, size = 0x38000, scoped, tag = 'input window, operand 1, single buffered']
    #allocation6 [shape = 's32[1]{0}', space=sflag, size = 0x4, scoped, tag = 'scoped memory for tpu_custom_call.1']
    #allocation7 [shape = 'u8[8192]{0}', space=vmem, size = 0x2000, scoped, tag = 'output window, operand 0, single buffered']
    %8 = vsyncpa [#allocation3], 0
    %9 = vsyncpa [#allocation6], 0
    %10 = vsyncpa [#allocation4], 0
    // Predicated region
    $region2: #{tpu_custom_call.1} parent=1 // pred_check
      _
    $region3: #{tpu_custom_call.1} parent=1 // pred_check_branch
      %12 = sbr.rel (0) target = $region5
    $region4: #{tpu_custom_call.1} parent=1 // pred_region
      %14 = vsyncadd [#allocation3], 0
      %s15 = sshll.u32 %s0, 4
      %s16 = int_to_ptr.hbm [resolvable:$true] %s15
      %s17 = sshll.u32 [#allocation2], 4
      %s18 = int_to_ptr.vmem [resolvable:$true] %s17
      %23 = dma.hbm_to_vmem [thread:$0]  %s16, 128, %s18, [#allocation3], 64, 64, 4
    $region5: #{tpu_custom_call.1} parent=1 // pred_fallthru
      _
    // Predicated region
    $region6: #{tpu_custom_call.1} parent=1 // pred_check
      _
    $region7: #{tpu_custom_call.1} parent=1 // pred_check_branch
      %25 = sbr.rel (0) target = $region9
    $region8: #{tpu_custom_call.1} parent=1 // pred_region
      %27 = vsyncadd [#allocation6], 0
      %s28 = sshll.u32 %s1, 4
      %s29 = int_to_ptr.hbm [resolvable:$true] %s28
      %s30 = sshll.u32 [#allocation5], 4
      %s31 = int_to_ptr.vmem [resolvable:$true] %s30
      %36 = dma.hbm_to_vmem [thread:$0]  %s29, 7168, %s31, [#allocation6], 64, 64, 4
    $region9: #{tpu_custom_call.1} parent=1 // pred_fallthru
      _
    // Predicated region
    $region10: #{tpu_custom_call.1} parent=1 // pred_check
      _
    $region11: #{tpu_custom_call.1} parent=1 // pred_check_branch
      %38 = sbr.rel (0) target = $region13
    $region12: #{tpu_custom_call.1} parent=1 // pred_region
      _
    $region13: #{tpu_custom_call.1} parent=1 // pred_fallthru
      _
    // Predicated region
    $region14: #{tpu_custom_call.1} parent=1 // pred_check
      _
    $region15: #{tpu_custom_call.1} parent=1 // pred_check_branch
      %40 = sbr.rel (0) target = $region17
    $region16: #{tpu_custom_call.1} parent=1 // pred_region
      %42 = dma.done [#allocation3], 128
    $region17: #{tpu_custom_call.1} parent=1 // pred_fallthru
      _
    // Predicated region
    $region18: #{tpu_custom_call.1} parent=1 // pred_check
      _
    $region19: #{tpu_custom_call.1} parent=1 // pred_check_branch
      %44 = sbr.rel (0) target = $region21
    $region20: #{tpu_custom_call.1} parent=1 // pred_region
      %46 = dma.done [#allocation6], 7168
    $region21: #{tpu_custom_call.1} parent=1 // pred_fallthru
      _
    %v47 = vld [vmem:[#allocation2] sm:$0xf]
    %v48 = vld [vmem:[#allocation2 + $0x4] sm:$0xf]
    %v49 = vld [vmem:[#allocation5] sm:$0xf]
    %v50 = vld [vmem:[#allocation5 + $0x4] sm:$0xf]
    %v51 = vld [vmem:[#allocation5 + $0x8] sm:$0xf]
    %v52 = vld [vmem:[#allocation5 + $0xc] sm:$0xf]
    %v53 = vld [vmem:[#allocation5 + $0x10] sm:$0xf]
    %v54 = vld [vmem:[#allocation5 + $0x14] sm:$0xf]
    %v55 = vld [vmem:[#allocation5 + $0x18] sm:$0xf]
    %v56 = vld [vmem:[#allocation5 + $0x1c] sm:$0xf]
    %v57 = vld [vmem:[#allocation5 + $0x20] sm:$0xf]
    %v58 = vld [vmem:[#allocation5 + $0x24] sm:$0xf]
    %v59 = vld [vmem:[#allocation5 + $0x28] sm:$0xf]
    %v60 = vld [vmem:[#allocation5 + $0x2c] sm:$0xf]
    %v61 = vld [vmem:[#allocation5 + $0x30] sm:$0xf]
    %v62 = vld [vmem:[#allocation5 + $0x34] sm:$0xf]
    %v63 = vld [vmem:[#allocation5 + $0x38] sm:$0xf]
    %v64 = vld [vmem:[#allocation5 + $0x3c] sm:$0xf]
    %v67 = vunpack.c.l.b16 %v47
    %v68 = vunpack.c.l.b16 %v48
    %v69 = vpack.c.b16 %v68, %v67
    %v87 = vunpack.c.l.b16 %v49
    %v88 = vunpack.c.l.b16 %v50
    %v89 = vunpack.c.l.b16 %v51
    %v90 = vunpack.c.l.b16 %v52
    %v91 = vunpack.c.l.b16 %v53
    %v92 = vunpack.c.l.b16 %v54
    %v93 = vunpack.c.l.b16 %v55
    %v94 = vunpack.c.l.b16 %v56
    %v95 = vunpack.c.l.b16 %v57
    %v96 = vunpack.c.l.b16 %v58
    %v97 = vunpack.c.l.b16 %v59
    %v98 = vunpack.c.l.b16 %v60
    %v99 = vunpack.c.l.b16 %v61
    %v100 = vunpack.c.l.b16 %v62
    %v101 = vunpack.c.l.b16 %v63
    %v102 = vunpack.c.l.b16 %v64
    %v103 = vpack.c.b16 %v88, %v87
    %v104 = vpack.c.b16 %v90, %v89
    %v105 = vpack.c.b16 %v92, %v91
    %v106 = vpack.c.b16 %v94, %v93
    %v107 = vpack.c.b16 %v96, %v95
    %v108 = vpack.c.b16 %v98, %v97
    %v109 = vpack.c.b16 %v100, %v99
    %v110 = vpack.c.b16 %v102, %v101
    %119 = vmatpush.bf16.msra.mxu0 %v110
    %120 = vmatpush.bf16.msra.mxu0 %v109
    %121 = vmatpush.bf16.msra.mxu0 %v108
    %122 = vmatpush.bf16.msra.mxu0 %v107
    %123 = vmatpush.bf16.msra.mxu0 %v106
    %124 = vmatpush.bf16.msra.mxu0 %v105
    %125 = vmatpush.bf16.msra.mxu0 %v104
    %126 = vmatpush.bf16.msra.mxu0 %v103
    %127 = vmatmul.bf16.gmra.mxu0 %v69
    %v128 = vpop.f32.mrf.mxu0
    %v129 = vadd.f32 0.0, %v128
    %v130 = vpop.f32.mrf.mxu0
    %v131 = vadd.f32 0.0, %v130
    %132 = vdwg.mxu0
    %v133 = vmax.f32 %v129, 0.0
    %v134 = vmax.f32 %v131, 0.0
    %v135 = vpack.c.bf16 %v134, %v133
    %s136 = scalar_lea.vmem [#allocation5], 64
    %v137 = vld [vmem:[%s136] sm:$0xf]
    %v138 = vld [vmem:[%s136 + $0x4] sm:$0xf]
    %v139 = vld [vmem:[%s136 + $0x8] sm:$0xf]
    %v140 = vld [vmem:[%s136 + $0xc] sm:$0xf]
    %v141 = vld [vmem:[%s136 + $0x10] sm:$0xf]
    %v142 = vld [vmem:[%s136 + $0x14] sm:$0xf]
    %v143 = vld [vmem:[%s136 + $0x18] sm:$0xf]
    %v144 = vld [vmem:[%s136 + $0x1c] sm:$0xf]
    %v145 = vld [vmem:[%s136 + $0x20] sm:$0xf]
    %v146 = vld [vmem:[%s136 + $0x24] sm:$0xf]
    %v147 = vld [vmem:[%s136 + $0x28] sm:$0xf]
    %v148 = vld [vmem:[%s136 + $0x2c] sm:$0xf]
    %v149 = vld [vmem:[%s136 + $0x30] sm:$0xf]
    %v150 = vld [vmem:[%s136 + $0x34] sm:$0xf]
    %v151 = vld [vmem:[%s136 + $0x38] sm:$0xf]
    %v152 = vld [vmem:[%s136 + $0x3c] sm:$0xf]
    %v169 = vunpack.c.l.b16 %v137
    %v170 = vunpack.c.l.b16 %v138
    %v171 = vunpack.c.l.b16 %v139
    %v172 = vunpack.c.l.b16 %v140
    %v173 = vunpack.c.l.b16 %v141
    %v174 = vunpack.c.l.b16 %v142
    %v175 = vunpack.c.l.b16 %v143
    %v176 = vunpack.c.l.b16 %v144
    %v177 = vunpack.c.l.b16 %v145
    %v178 = vunpack.c.l.b16 %v146
    %v179 = vunpack.c.l.b16 %v147
    %v180 = vunpack.c.l.b16 %v148
    %v181 = vunpack.c.l.b16 %v149
    %v182 = vunpack.c.l.b16 %v150
    %v183 = vunpack.c.l.b16 %v151
    %v184 = vunpack.c.l.b16 %v152
    %v185 = vpack.c.b16 %v170, %v169
    %v186 = vpack.c.b16 %v172, %v171
    %v187 = vpack.c.b16 %v174, %v173
    %v188 = vpack.c.b16 %v176, %v175
    %v189 = vpack.c.b16 %v178, %v177
    %v190 = vpack.c.b16 %v180, %v179
    %v191 = vpack.c.b16 %v182, %v181
    %v192 = vpack.c.b16 %v184, %v183
    %201 = vmatpush.bf16.msra.mxu0 %v192
    %202 = vmatpush.bf16.msra.mxu0 %v191
    %203 = vmatpush.bf16.msra.mxu0 %v190
    %204 = vmatpush.bf16.msra.mxu0 %v189
    %205 = vmatpush.bf16.msra.mxu0 %v188
    %206 = vmatpush.bf16.msra.mxu0 %v187
    %207 = vmatpush.bf16.msra.mxu0 %v186
    %208 = vmatpush.bf16.msra.mxu0 %v185
    %209 = vmatmul.bf16.gmra.mxu0 %v135
    %v210 = vpop.f32.mrf.mxu0
    %v211 = vadd.f32 0.0, %v210
    %v212 = vpop.f32.mrf.mxu0
    %v213 = vadd.f32 0.0, %v212
    %214 = vdwg.mxu0
    %v215 = vmax.f32 %v211, 0.0
    %v216 = vmax.f32 %v213, 0.0
    %v217 = vpack.c.bf16 %v216, %v215
    %s218 = scalar_lea.vmem [#allocation5], 128
    %v219 = vld [vmem:[%s218] sm:$0xf]
    %v220 = vld [vmem:[%s218 + $0x4] sm:$0xf]
    %v221 = vld [vmem:[%s218 + $0x8] sm:$0xf]
    %v222 = vld [vmem:[%s218 + $0xc] sm:$0xf]
    %v223 = vld [vmem:[%s218 + $0x10] sm:$0xf]
    %v224 = vld [vmem:[%s218 + $0x14] sm:$0xf]
    %v225 = vld [vmem:[%s218 + $0x18] sm:$0xf]
    %v226 = vld [vmem:[%s218 + $0x1c] sm:$0xf]
    %v227 = vld [vmem:[%s218 + $0x20] sm:$0xf]
    %v228 = vld [vmem:[%s218 + $0x24] sm:$0xf]
    %v229 = vld [vmem:[%s218 + $0x28] sm:$0xf]
    %v230 = vld [vmem:[%s218 + $0x2c] sm:$0xf]
    %v231 = vld [vmem:[%s218 + $0x30] sm:$0xf]
    %v232 = vld [vmem:[%s218 + $0x34] sm:$0xf]
    %v233 = vld [vmem:[%s218 + $0x38] sm:$0xf]
    %v234 = vld [vmem:[%s218 + $0x3c] sm:$0xf]
    %v251 = vunpack.c.l.b16 %v219
    %v252 = vunpack.c.l.b16 %v220
    %v253 = vunpack.c.l.b16 %v221
    %v254 = vunpack.c.l.b16 %v222
    %v255 = vunpack.c.l.b16 %v223
    %v256 = vunpack.c.l.b16 %v224
    %v257 = vunpack.c.l.b16 %v225
    %v258 = vunpack.c.l.b16 %v226
    %v259 = vunpack.c.l.b16 %v227
    %v260 = vunpack.c.l.b16 %v228
    %v261 = vunpack.c.l.b16 %v229
    %v262 = vunpack.c.l.b16 %v230
    %v263 = vunpack.c.l.b16 %v231
    %v264 = vunpack.c.l.b16 %v232
    %v265 = vunpack.c.l.b16 %v233
    %v266 = vunpack.c.l.b16 %v234
    %v267 = vpack.c.b16 %v252, %v251
    %v268 = vpack.c.b16 %v254, %v253
    %v269 = vpack.c.b16 %v256, %v255
    %v270 = vpack.c.b16 %v258, %v257
    %v271 = vpack.c.b16 %v260, %v259
    %v272 = vpack.c.b16 %v262, %v261
    %v273 = vpack.c.b16 %v264, %v263
    %v274 = vpack.c.b16 %v266, %v265
    %283 = vmatpush.bf16.msra.mxu0 %v274
    %284 = vmatpush.bf16.msra.mxu0 %v273
    %285 = vmatpush.bf16.msra.mxu0 %v272
    %286 = vmatpush.bf16.msra.mxu0 %v271
    %287 = vmatpush.bf16.msra.mxu0 %v270
    %288 = vmatpush.bf16.msra.mxu0 %v269
    %289 = vmatpush.bf16.msra.mxu0 %v268
    %290 = vmatpush.bf16.msra.mxu0 %v267
    %291 = vmatmul.bf16.gmra.mxu0 %v217
    %v292 = vpop.f32.mrf.mxu0
    %v293 = vadd.f32 0.0, %v292
    %v294 = vpop.f32.mrf.mxu0
    %v295 = vadd.f32 0.0, %v294
    %296 = vdwg.mxu0
    %v297 = vmax.f32 %v293, 0.0
    %v298 = vmax.f32 %v295, 0.0
    %v299 = vpack.c.bf16 %v298, %v297
    %s300 = scalar_lea.vmem [#allocation5], 192
    %v301 = vld [vmem:[%s300] sm:$0xf]
    %v302 = vld [vmem:[%s300 + $0x4] sm:$0xf]
    %v303 = vld [vmem:[%s300 + $0x8] sm:$0xf]
    %v304 = vld [vmem:[%s300 + $0xc] sm:$0xf]
    %v305 = vld [vmem:[%s300 + $0x10] sm:$0xf]
    %v306 = vld [vmem:[%s300 + $0x14] sm:$0xf]
    %v307 = vld [vmem:[%s300 + $0x18] sm:$0xf]
    %v308 = vld [vmem:[%s300 + $0x1c] sm:$0xf]
    %v309 = vld [vmem:[%s300 + $0x20] sm:$0xf]
    %v310 = vld [vmem:[%s300 + $0x24] sm:$0xf]
    %v311 = vld [vmem:[%s300 + $0x28] sm:$0xf]
    %v312 = vld [vmem:[%s300 + $0x2c] sm:$0xf]
    %v313 = vld [vmem:[%s300 + $0x30] sm:$0xf]
    %v314 = vld [vmem:[%s300 + $0x34] sm:$0xf]
    %v315 = vld [vmem:[%s300 + $0x38] sm:$0xf]
    %v316 = vld [vmem:[%s300 + $0x3c] sm:$0xf]
    %v333 = vunpack.c.l.b16 %v301
    %v334 = vunpack.c.l.b16 %v302
    %v335 = vunpack.c.l.b16 %v303
    %v336 = vunpack.c.l.b16 %v304
    %v337 = vunpack.c.l.b16 %v305
    %v338 = vunpack.c.l.b16 %v306
    %v339 = vunpack.c.l.b16 %v307
    %v340 = vunpack.c.l.b16 %v308
    %v341 = vunpack.c.l.b16 %v309
    %v342 = vunpack.c.l.b16 %v310
    %v343 = vunpack.c.l.b16 %v311
    %v344 = vunpack.c.l.b16 %v312
    %v345 = vunpack.c.l.b16 %v313
    %v346 = vunpack.c.l.b16 %v314
    %v347 = vunpack.c.l.b16 %v315
    %v348 = vunpack.c.l.b16 %v316
    %v349 = vpack.c.b16 %v334, %v333
    %v350 = vpack.c.b16 %v336, %v335
    %v351 = vpack.c.b16 %v338, %v337
    %v352 = vpack.c.b16 %v340, %v339
    %v353 = vpack.c.b16 %v342, %v341
    %v354 = vpack.c.b16 %v344, %v343
    %v355 = vpack.c.b16 %v346, %v345
    %v356 = vpack.c.b16 %v348, %v347
    %365 = vmatpush.bf16.msra.mxu0 %v356
    %366 = vmatpush.bf16.msra.mxu0 %v355
    %367 = vmatpush.bf16.msra.mxu0 %v354
    %368 = vmatpush.bf16.msra.mxu0 %v353
    %369 = vmatpush.bf16.msra.mxu0 %v352
    %370 = vmatpush.bf16.msra.mxu0 %v351
    %371 = vmatpush.bf16.msra.mxu0 %v350
    %372 = vmatpush.bf16.msra.mxu0 %v349
    %373 = vmatmul.bf16.gmra.mxu0 %v299
    %v374 = vpop.f32.mrf.mxu0
    %v375 = vadd.f32 0.0, %v374
    %v376 = vpop.f32.mrf.mxu0
    %v377 = vadd.f32 0.0, %v376
    %378 = vdwg.mxu0
    %v379 = vmax.f32 %v375, 0.0
    %v380 = vmax.f32 %v377, 0.0
    %v381 = vpack.c.bf16 %v380, %v379
    %s382 = scalar_lea.vmem [#allocation5], 256
    %v383 = vld [vmem:[%s382] sm:$0xf]
    %v384 = vld [vmem:[%s382 + $0x4] sm:$0xf]
    %v385 = vld [vmem:[%s382 + $0x8] sm:$0xf]
    %v386 = vld [vmem:[%s382 + $0xc] sm:$0xf]
    %v387 = vld [vmem:[%s382 + $0x10] sm:$0xf]
    %v388 = vld [vmem:[%s382 + $0x14] sm:$0xf]
    %v389 = vld [vmem:[%s382 + $0x18] sm:$0xf]
    %v390 = vld [vmem:[%s382 + $0x1c] sm:$0xf]
    %v391 = vld [vmem:[%s382 + $0x20] sm:$0xf]
    %v392 = vld [vmem:[%s382 + $0x24] sm:$0xf]
    %v393 = vld [vmem:[%s382 + $0x28] sm:$0xf]
    %v394 = vld [vmem:[%s382 + $0x2c] sm:$0xf]
    %v395 = vld [vmem:[%s382 + $0x30] sm:$0xf]
    %v396 = vld [vmem:[%s382 + $0x34] sm:$0xf]
    %v397 = vld [vmem:[%s382 + $0x38] sm:$0xf]
    %v398 = vld [vmem:[%s382 + $0x3c] sm:$0xf]
    %v415 = vunpack.c.l.b16 %v383
    %v416 = vunpack.c.l.b16 %v384
    %v417 = vunpack.c.l.b16 %v385
    %v418 = vunpack.c.l.b16 %v386
    %v419 = vunpack.c.l.b16 %v387
    %v420 = vunpack.c.l.b16 %v388
    %v421 = vunpack.c.l.b16 %v389
    %v422 = vunpack.c.l.b16 %v390
    %v423 = vunpack.c.l.b16 %v391
    %v424 = vunpack.c.l.b16 %v392
    %v425 = vunpack.c.l.b16 %v393
    %v426 = vunpack.c.l.b16 %v394
    %v427 = vunpack.c.l.b16 %v395
    %v428 = vunpack.c.l.b16 %v396
    %v429 = vunpack.c.l.b16 %v397
    %v430 = vunpack.c.l.b16 %v398
    %v431 = vpack.c.b16 %v416, %v415
    %v432 = vpack.c.b16 %v418, %v417
    %v433 = vpack.c.b16 %v420, %v419
    %v434 = vpack.c.b16 %v422, %v421
    %v435 = vpack.c.b16 %v424, %v423
    %v436 = vpack.c.b16 %v426, %v425
    %v437 = vpack.c.b16 %v428, %v427
    %v438 = vpack.c.b16 %v430, %v429
    %447 = vmatpush.bf16.msra.mxu0 %v438
    %448 = vmatpush.bf16.msra.mxu0 %v437
    %449 = vmatpush.bf16.msra.mxu0 %v436
    %450 = vmatpush.bf16.msra.mxu0 %v435
    %451 = vmatpush.bf16.msra.mxu0 %v434
    %452 = vmatpush.bf16.msra.mxu0 %v433
    %453 = vmatpush.bf16.msra.mxu0 %v432
    %454 = vmatpush.bf16.msra.mxu0 %v431
    %455 = vmatmul.bf16.gmra.mxu0 %v381
    %v456 = vpop.f32.mrf.mxu0
    %v457 = vadd.f32 0.0, %v456
    %v458 = vpop.f32.mrf.mxu0
    %v459 = vadd.f32 0.0, %v458
    %460 = vdwg.mxu0
    %v461 = vmax.f32 %v457, 0.0
    %v462 = vmax.f32 %v459, 0.0
    %v463 = vpack.c.bf16 %v462, %v461
    %s464 = scalar_lea.vmem [#allocation5], 320
    %v465 = vld [vmem:[%s464] sm:$0xf]
    %v466 = vld [vmem:[%s464 + $0x4] sm:$0xf]
    %v467 = vld [vmem:[%s464 + $0x8] sm:$0xf]
    %v468 = vld [vmem:[%s464 + $0xc] sm:$0xf]
    %v469 = vld [vmem:[%s464 + $0x10] sm:$0xf]
    %v470 = vld [vmem:[%s464 + $0x14] sm:$0xf]
    %v471 = vld [vmem:[%s464 + $0x18] sm:$0xf]
    %v472 = vld [vmem:[%s464 + $0x1c] sm:$0xf]
    %v473 = vld [vmem:[%s464 + $0x20] sm:$0xf]
    %v474 = vld [vmem:[%s464 + $0x24] sm:$0xf]
    %v475 = vld [vmem:[%s464 + $0x28] sm:$0xf]
    %v476 = vld [vmem:[%s464 + $0x2c] sm:$0xf]
    %v477 = vld [vmem:[%s464 + $0x30] sm:$0xf]
    %v478 = vld [vmem:[%s464 + $0x34] sm:$0xf]
    %v479 = vld [vmem:[%s464 + $0x38] sm:$0xf]
    %v480 = vld [vmem:[%s464 + $0x3c] sm:$0xf]
    %v497 = vunpack.c.l.b16 %v465
    %v498 = vunpack.c.l.b16 %v466
    %v499 = vunpack.c.l.b16 %v467
    %v500 = vunpack.c.l.b16 %v468
    %v501 = vunpack.c.l.b16 %v469
    %v502 = vunpack.c.l.b16 %v470
    %v503 = vunpack.c.l.b16 %v471
    %v504 = vunpack.c.l.b16 %v472
    %v505 = vunpack.c.l.b16 %v473
    %v506 = vunpack.c.l.b16 %v474
    %v507 = vunpack.c.l.b16 %v475
    %v508 = vunpack.c.l.b16 %v476
    %v509 = vunpack.c.l.b16 %v477
    %v510 = vunpack.c.l.b16 %v478
    %v511 = vunpack.c.l.b16 %v479
    %v512 = vunpack.c.l.b16 %v480
    %v513 = vpack.c.b16 %v498, %v497
    %v514 = vpack.c.b16 %v500, %v499
    %v515 = vpack.c.b16 %v502, %v501
    %v516 = vpack.c.b16 %v504, %v503
    %v517 = vpack.c.b16 %v506, %v505
    %v518 = vpack.c.b16 %v508, %v507
    %v519 = vpack.c.b16 %v510, %v509
    %v520 = vpack.c.b16 %v512, %v511
    %529 = vmatpush.bf16.msra.mxu0 %v520
    %530 = vmatpush.bf16.msra.mxu0 %v519
    %531 = vmatpush.bf16.msra.mxu0 %v518
    %532 = vmatpush.bf16.msra.mxu0 %v517
    %533 = vmatpush.bf16.msra.mxu0 %v516
    %534 = vmatpush.bf16.msra.mxu0 %v515
    %535 = vmatpush.bf16.msra.mxu0 %v514
    %536 = vmatpush.bf16.msra.mxu0 %v513
    %537 = vmatmul.bf16.gmra.mxu0 %v463
    %v538 = vpop.f32.mrf.mxu0
    %v539 = vadd.f32 0.0, %v538
    %v540 = vpop.f32.mrf.mxu0
    %v541 = vadd.f32 0.0, %v540
    %542 = vdwg.mxu0
    %v543 = vmax.f32 %v539, 0.0
    %v544 = vmax.f32 %v541, 0.0
    %v545 = vpack.c.bf16 %v544, %v543
    %s546 = scalar_lea.vmem [#allocation5], 384
    %v547 = vld [vmem:[%s546] sm:$0xf]
    %v548 = vld [vmem:[%s546 + $0x4] sm:$0xf]
    %v549 = vld [vmem:[%s546 + $0x8] sm:$0xf]
    %v550 = vld [vmem:[%s546 + $0xc] sm:$0xf]
    %v551 = vld [vmem:[%s546 + $0x10] sm:$0xf]
    %v552 = vld [vmem:[%s546 + $0x14] sm:$0xf]
    %v553 = vld [vmem:[%s546 + $0x18] sm:$0xf]
    %v554 = vld [vmem:[%s546 + $0x1c] sm:$0xf]
    %v555 = vld [vmem:[%s546 + $0x20] sm:$0xf]
    %v556 = vld [vmem:[%s546 + $0x24] sm:$0xf]
    %v557 = vld [vmem:[%s546 + $0x28] sm:$0xf]
    %v558 = vld [vmem:[%s546 + $0x2c] sm:$0xf]
    %v559 = vld [vmem:[%s546 + $0x30] sm:$0xf]
    %v560 = vld [vmem:[%s546 + $0x34] sm:$0xf]
    %v561 = vld [vmem:[%s546 + $0x38] sm:$0xf]
    %v562 = vld [vmem:[%s546 + $0x3c] sm:$0xf]
    %v579 = vunpack.c.l.b16 %v547
    %v580 = vunpack.c.l.b16 %v548
    %v581 = vunpack.c.l.b16 %v549
    %v582 = vunpack.c.l.b16 %v550
    %v583 = vunpack.c.l.b16 %v551
    %v584 = vunpack.c.l.b16 %v552
    %v585 = vunpack.c.l.b16 %v553
    %v586 = vunpack.c.l.b16 %v554
    %v587 = vunpack.c.l.b16 %v555
    %v588 = vunpack.c.l.b16 %v556
    %v589 = vunpack.c.l.b16 %v557
    %v590 = vunpack.c.l.b16 %v558
    %v591 = vunpack.c.l.b16 %v559
    %v592 = vunpack.c.l.b16 %v560
    %v593 = vunpack.c.l.b16 %v561
    %v594 = vunpack.c.l.b16 %v562
    %v595 = vpack.c.b16 %v580, %v579
    %v596 = vpack.c.b16 %v582, %v581
    %v597 = vpack.c.b16 %v584, %v583
    %v598 = vpack.c.b16 %v586, %v585
    %v599 = vpack.c.b16 %v588, %v587
    %v600 = vpack.c.b16 %v590, %v589
    %v601 = vpack.c.b16 %v592, %v591
    %v602 = vpack.c.b16 %v594, %v593
    %611 = vmatpush.bf16.msra.mxu0 %v602
    %612 = vmatpush.bf16.msra.mxu0 %v601
    %613 = vmatpush.bf16.msra.mxu0 %v600
    %614 = vmatpush.bf16.msra.mxu0 %v599
    %615 = vmatpush.bf16.msra.mxu0 %v598
    %616 = vmatpush.bf16.msra.mxu0 %v597
    %617 = vmatpush.bf16.msra.mxu0 %v596
    %618 = vmatpush.bf16.msra.mxu0 %v595
    %619 = vmatmul.bf16.gmra.mxu0 %v545
    %v620 = vpop.f32.mrf.mxu0
    %v621 = vadd.f32 0.0, %v620
    %v622 = vpop.f32.mrf.mxu0
    %v623 = vadd.f32 0.0, %v622
    %624 = vdwg.mxu0
    %v625 = vmax.f32 %v621, 0.0
    %v626 = vmax.f32 %v623, 0.0
    %v627 = vld [vmem:[%s2] sm:$0x1]
    %v629 = vperm.slane %v627, 0
    %v631 = vmul.f32 %v625, %v629
    %v632 = vmul.f32 %v626, %v629
    %633 = vadd.xlane.f32.xlu0 %v631
    %v634 = vpop.xlane.xlu0 %633
    %635 = vadd.xlane.f32.xlu0 %v632
    %v636 = vpop.xlane.xlu0 %635
    %637 = vst [vmem:[#allocation7] sm:$0xff] %v634
    %638 = vst [vmem:[#allocation7 + $0x8] sm:$0xff] %v636
    // Predicated region
    $region22: #{tpu_custom_call.1} parent=1 // pred_check
      _
    $region23: #{tpu_custom_call.1} parent=1 // pred_check_branch
      %640 = sbr.rel (0) target = $region25
    $region24: #{tpu_custom_call.1} parent=1 // pred_region
      %642 = vsyncadd [#allocation4], 0
      %s643 = sshll.u32 [#allocation7], 4
      %s644 = int_to_ptr.vmem [resolvable:$true] %s643
      %s645 = sshll.u32 %s3, 4
      %s646 = int_to_ptr.hbm [resolvable:$true] %s645
      %651 = dma.vmem_to_hbm [thread:$0]  %s644, 256, %s646, [#allocation4], 128, 128, 8
    $region25: #{tpu_custom_call.1} parent=1 // pred_fallthru
      _
    // Predicated region
    $region26: #{tpu_custom_call.1} parent=1 // pred_check
      _
    $region27: #{tpu_custom_call.1} parent=1 // pred_check_branch
      %653 = sbr.rel (0) target = $region29
    $region28: #{tpu_custom_call.1} parent=1 // pred_region
      %655 = dma.done [#allocation4], 256
    $region29: #{tpu_custom_call.1} parent=1 // pred_fallthru
      _
    %656 = vsyncpa [#allocation3], 1
    %657 = vsyncpa [#allocation6], 1
    %658 = vsyncpa [#allocation4], 1

</llo_original>
